<compile_context>
chip_gen: v7x
topology: tpu7x:2x2x1
jax: 0.10.0
libtpu: 0.0.40
codegen_flags: <defaults>
</compile_context>

<pallas_src>
import jax
import jax.numpy as jnp
from jax.experimental import pallas as pl
from jax.experimental.pallas import tpu as pltpu


# ---------------------------------------------------------------------------
# kernels: (TM, Kp) patches x (Kp, OGP) weights -> (TM, OGP) int8 requantized
# ---------------------------------------------------------------------------
def _qconv_kernel_i8(p_ref, w_ref, b_ref, r_ref, o_ref):
    # p_ref: (1, TM, Kp) int8 patches   w_ref: (1, Kp, OGP) int8 weights
    # b_ref: (1, 1, OGP) f32 fused bias (= b_int * rescale)
    # r_ref: (1, 1, OGP) f32 per-out-channel requant scale
    # o_ref: (1, TM, OGP) int8 quantized output
    acc = jnp.dot(p_ref[0], w_ref[0], preferred_element_type=jnp.int32)
    q = jnp.round(acc.astype(jnp.float32) * r_ref[0] + b_ref[0])
    o_ref[0] = jnp.clip(q, -128.0, 127.0).astype(jnp.int8)


def _qconv_kernel_bf16(p_ref, w_ref, b_ref, r_ref, o_ref):
    # bf16 MXU path (v7x & other non-int8-MXU parts): int8 is exact in bf16,
    # accumulate in f32 (exact while |acc| < 2^24).
    acc = jnp.dot(p_ref[0].astype(jnp.bfloat16), w_ref[0].astype(jnp.bfloat16),
                  preferred_element_type=jnp.float32)
    q = jnp.round(acc * r_ref[0] + b_ref[0])
    o_ref[0] = jnp.clip(q, -128.0, 127.0).astype(jnp.int8)


# ---------------------------------------------------------------------------
# host-side glue
# ---------------------------------------------------------------------------
def _round_up(x, m):
    return ((x + m - 1) // m) * m


def _mxu_has_int8():
    try:
        kind = jax.devices()[0].device_kind.lower()
    except Exception:
        return False
    return ("v5" in kind) or ("v6" in kind)


def _im2col_int8(x_nhwc, kh, kw, stride, padding, dilation):
    """Extract conv patches in int8. Returns ((N*OH*OW, KH*KW*C), OH, OW)."""
    N, H, W, C = x_nhwc.shape
    sh, sw = stride
    ph, pw = padding
    dh, dw = dilation
    oh = (H + 2 * ph - dh * (kh - 1) - 1) // sh + 1
    ow = (W + 2 * pw - dw * (kw - 1) - 1) // sw + 1
    xp = jnp.pad(x_nhwc, ((0, 0), (ph, ph), (pw, pw), (0, 0)))
    cols = []
    for i in range(kh):
        for j in range(kw):
            hs, ws = i * dh, j * dw
            cols.append(xp[:, hs:hs + (oh - 1) * sh + 1:sh,
                           ws:ws + (ow - 1) * sw + 1:sw, :])
    patches = jnp.concatenate(cols, axis=-1)      # (N, OH, OW, KH*KW*C) int8
    return patches.reshape(N * oh * ow, kh * kw * C), oh, ow


def quantized_conv2d(x_int8, weight_f, bias_f, weight_scale, input_scale,
                     out_scale, stride, padding, dilation, groups):
    """Forward of the quantized Conv2d module. Returns int8 NCHW (qint8 repr)."""
    N, C, H, W = x_int8.shape
    O, Cg, KH, KW = weight_f.shape
    assert C % groups == 0 and O % groups == 0 and C // groups == Cg
    Og = O // groups

    # --- parameter quantization (glue, plain JAX) -------------------------
    w_int = jnp.clip(jnp.round(weight_f / weight_scale[:, None, None, None]),
                     -128, 127).astype(jnp.int8)
    bias_q_scale = input_scale * weight_scale                  # qint32 bias scale
    b_int = jnp.round(bias_f / bias_q_scale)
    rescale = (bias_q_scale / out_scale).astype(jnp.float32)   # per-channel requant
    fused_bias = (b_int * rescale).astype(jnp.float32)         # bias folded in

    x_nhwc = jnp.transpose(x_int8, (0, 2, 3, 1))               # int8 NHWC

    # output extent / tiling constants
    sh, sw = stride
    ph, pw = padding
    dh, dw = dilation
    oh = (H + 2 * ph - dh * (KH - 1) - 1) // sh + 1
    ow = (W + 2 * pw - dw * (KW - 1) - 1) // sw + 1
    M = N * oh * ow
    K = KH * KW * Cg
    K_pad = _round_up(K, 128)          # aligned contraction (zero padded)
    OGP = _round_up(Og, 128)           # lane-dense output channels

    # largest TM (multiple of 32) whose double-buffered int8 working set stays
    # well inside the default scoped VMEM (16 MiB on v5e, 32 MiB v6e/v7x).
    budget = 8 * 1024 * 1024
    TM = 32
    for cand in (2048, 1024, 512, 256, 128, 64, 32):
        if 2 * cand * K_pad + 2 * K_pad * OGP + 2 * cand * OGP <= budget:
            TM = cand
            break
    TM = min(TM, _round_up(M, 32))
    M_pad = _round_up(M, TM)

    patches_l, w_l, b_l, r_l = [], [], [], []
    for g in range(groups):
        xg = x_nhwc[..., g * Cg:(g + 1) * Cg]
        pg, _, _ = _im2col_int8(xg, KH, KW, stride, padding, dilation)
        pg = jnp.pad(pg, ((0, M_pad - M), (0, K_pad - K)))
        # weight (Og, Cg, KH, KW) -> (KH, KW, Cg, Og) -> (K, Og), matching the
        # patch ordering (kh-major, then kw, then channel).
        wg = jnp.transpose(w_int[g * Og:(g + 1) * Og],
                           (2, 3, 1, 0)).reshape(K, Og)
        wg = jnp.pad(wg, ((0, K_pad - K), (0, OGP - Og)))
        patches_l.append(pg)
        w_l.append(wg)
        b_l.append(jnp.pad(fused_bias[g * Og:(g + 1) * Og], (0, OGP - Og)))
        r_l.append(jnp.pad(rescale[g * Og:(g + 1) * Og], (0, OGP - Og)))

    patches = jnp.stack(patches_l)                        # (G, M_pad, K_pad) int8
    wmat = jnp.stack(w_l)                                 # (G, K_pad, OGP)   int8
    bmat = jnp.stack(b_l).reshape(groups, 1, OGP)         # (G, 1, OGP)       f32
    rmat = jnp.stack(r_l).reshape(groups, 1, OGP)         # (G, 1, OGP)       f32

    kernel = _qconv_kernel_i8 if _mxu_has_int8() else _qconv_kernel_bf16

    out = pl.pallas_call(
        kernel,
        out_shape=jax.ShapeDtypeStruct((groups, M_pad, OGP), jnp.int8),
        grid=(groups, M_pad // TM),
        in_specs=[
            pl.BlockSpec((1, TM, K_pad), lambda g, m: (g, m, 0)),
            pl.BlockSpec((1, K_pad, OGP), lambda g, m: (g, 0, 0)),
            pl.BlockSpec((1, 1, OGP), lambda g, m: (g, 0, 0)),
            pl.BlockSpec((1, 1, OGP), lambda g, m: (g, 0, 0)),
        ],
        out_specs=pl.BlockSpec((1, TM, OGP), lambda g, m: (g, m, 0)),
        compiler_params=pltpu.CompilerParams(
            dimension_semantics=("parallel", "parallel")),
        cost_estimate=pl.CostEstimate(
            flops=2 * groups * M_pad * K_pad * OGP,
            transcendentals=0,
            bytes_accessed=(patches.size + wmat.size
                            + 4 * (bmat.size + rmat.size)
                            + groups * M_pad * OGP)),
    )(patches, wmat, bmat, rmat)

    out = out[:, :M, :Og]                                  # strip padding
    out = out.reshape(groups, N, oh, ow, Og)
    out = jnp.transpose(out, (1, 0, 4, 2, 3)).reshape(N, O, oh, ow)
    return out                                             # int8 NCHW (qint8 repr)


# ---------------------------------------------------------------------------
# reference (same integer-emulated arithmetic, plain JAX conv)
# ---------------------------------------------------------------------------
def _reference(x_int8, weight_f, bias_f, weight_scale, input_scale, out_scale,
               stride, padding, dilation, groups):
    w_int = jnp.clip(jnp.round(weight_f / weight_scale[:, None, None, None]),
                     -128, 127)
    acc = jax.lax.conv_general_dilated(
        x_int8.astype(jnp.float32), w_int,
        window_strides=stride,
        padding=[(padding[0], padding[0]), (padding[1], padding[1])],
        rhs_dilation=dilation, feature_group_count=groups,
        dimension_numbers=('NCHW', 'OIHW', 'NCHW'))
    b_int = jnp.round(bias_f / (input_scale * weight_scale))
    acc = acc + b_int[None, :, None, None]
    resc = (input_scale * weight_scale / out_scale)[None, :, None, None]
    return jnp.clip(jnp.round(acc * resc), -128, 127).astype(jnp.int8)


if __name__ == "__main__":
    key = jax.random.PRNGKey(0)
    k1, k2, k3 = jax.random.split(key, 3)

    # module config (matches Conv2d(__init__) shapes)
    N, C, H, W = 2, 4, 16, 16
    O, KH, KW = 8, 3, 3
    stride, padding, dilation, groups = (1, 1), (1, 1), (1, 1), 1

    # deterministic "buffers": weight (O, C//g, KH, KW), bias (O,), scales
    x_int8 = jax.random.randint(k1, (N, C, H, W), -128, 128,
                                dtype=jnp.int32).astype(jnp.int8)
    weight_f = jax.random.normal(k2, (O, C // groups, KH, KW),
                                 dtype=jnp.float32) * 0.1
    bias_f = jax.random.normal(k3, (O,), dtype=jnp.float32) * 0.5

    input_scale = jnp.float32(0.02)
    weight_scale = jnp.max(jnp.abs(weight_f.reshape(O, -1)), axis=1) / 127.0
    out_scale = jnp.float32(0.05)

    out = quantized_conv2d(x_int8, weight_f, bias_f, weight_scale, input_scale,
                           out_scale, stride, padding, dilation, groups)
    out = jax.block_until_ready(out)
    assert out.shape == (N, O, H, W) and out.dtype == jnp.int8

    ref = _reference(x_int8, weight_f, bias_f, weight_scale, input_scale,
                     out_scale, stride, padding, dilation, groups)
    diff = jnp.max(jnp.abs(ref.astype(jnp.int32) - out.astype(jnp.int32)))
    assert int(diff) <= 1, f"max quantized diff {int(diff)} (groups=1)"

    # grouped + strided case, exercising the (groups, m) grid of the same kernel
    groups2, stride2 = 2, (2, 2)
    w2 = jax.random.normal(k2, (O, C // groups2, KH, KW),
                           dtype=jnp.float32) * 0.1
    ws2 = jnp.max(jnp.abs(w2.reshape(O, -1)), axis=1) / 127.0
    out2 = quantized_conv2d(x_int8, w2, bias_f, ws2, input_scale, out_scale,
                            stride2, padding, dilation, groups2)
    out2 = jax.block_until_ready(out2)
    ref2 = _reference(x_int8, w2, bias_f, ws2, input_scale, out_scale,
                      stride2, padding, dilation, groups2)
    assert out2.shape == ref2.shape and out2.dtype == jnp.int8
    diff2 = jnp.max(jnp.abs(ref2.astype(jnp.int32) - out2.astype(jnp.int32)))
    assert int(diff2) <= 1, f"max quantized diff {int(diff2)} (groups=2)"

    print("KERNEL_OK")
</pallas_src>

<mosaic_0001>
module attributes {stable_mosaic.version = 11 : i64} {
  func.func @_qconv_kernel_bf16(%arg0: i32, %arg1: i32, %arg2: memref<1x512x128xi8, #tpu.memory_space<vmem>>, %arg3: memref<1x128x128xi8, #tpu.memory_space<vmem>>, %arg4: memref<1x1x128xf32, #tpu.memory_space<vmem>>, %arg5: memref<1x1x128xf32, #tpu.memory_space<vmem>>, %arg6: memref<1x512x128xi8, #tpu.memory_space<vmem>>) attributes {dimension_semantics = [#tpu.dimension_semantics<parallel>, #tpu.dimension_semantics<parallel>], iteration_bounds = array<i64: 1, 1>, scalar_prefetch = 0 : i64, scratch_operands = 0 : i64, tpu.core_type = #tpu.core_type<tc>, window_params = [{transform_indices = @transform_0, window_bounds = array<i64: 1, 512, 128>}, {transform_indices = @transform_1, window_bounds = array<i64: 1, 128, 128>}, {transform_indices = @transform_2, window_bounds = array<i64: 1, 1, 128>}, {transform_indices = @transform_3, window_bounds = array<i64: 1, 1, 128>}, {transform_indices = @transform_4, window_bounds = array<i64: 1, 512, 128>}]} {
    %c0 = arith.constant 0 : index
    %c0_0 = arith.constant 0 : index
    %c0_1 = arith.constant 0 : index
    %0 = vector.load %arg2[%c0, %c0_0, %c0_1] : memref<1x512x128xi8, #tpu.memory_space<vmem>>, vector<1x512x128xi8>
    %1 = vector.shape_cast %0 : vector<1x512x128xi8> to vector<512x128xi8>
    %2 = arith.sitofp %1 : vector<512x128xi8> to vector<512x128xbf16>
    %c0_2 = arith.constant 0 : index
    %c0_3 = arith.constant 0 : index
    %c0_4 = arith.constant 0 : index
    %3 = vector.load %arg3[%c0_2, %c0_3, %c0_4] : memref<1x128x128xi8, #tpu.memory_space<vmem>>, vector<1x128x128xi8>
    %4 = vector.shape_cast %3 : vector<1x128x128xi8> to vector<128x128xi8>
    %5 = arith.sitofp %4 : vector<128x128xi8> to vector<128x128xbf16>
    %cst = arith.constant dense<0.000000e+00> : vector<512x128xf32>
    %6 = tpu.matmul %2, %5, %cst {dimension_numbers = #tpu.dot_dimension_numbers<[1], [0], [0], [1], [0, 0, 1, 1], [], []>} : vector<512x128xbf16>, vector<128x128xbf16>, vector<512x128xf32> -> vector<512x128xf32>
    %c0_5 = arith.constant 0 : index
    %c0_6 = arith.constant 0 : index
    %c0_7 = arith.constant 0 : index
    %7 = vector.load %arg5[%c0_5, %c0_6, %c0_7] : memref<1x1x128xf32, #tpu.memory_space<vmem>>, vector<1x1x128xf32>
    %8 = vector.shape_cast %7 : vector<1x1x128xf32> to vector<1x128xf32>
    %9 = vector.broadcast %8 : vector<1x128xf32> to vector<512x128xf32>
    %10 = arith.mulf %6, %9 : vector<512x128xf32>
    %c0_8 = arith.constant 0 : index
    %c0_9 = arith.constant 0 : index
    %c0_10 = arith.constant 0 : index
    %11 = vector.load %arg4[%c0_8, %c0_9, %c0_10] : memref<1x1x128xf32, #tpu.memory_space<vmem>>, vector<1x1x128xf32>
    %12 = vector.shape_cast %11 : vector<1x1x128xf32> to vector<1x128xf32>
    %13 = vector.broadcast %12 : vector<1x128xf32> to vector<512x128xf32>
    %14 = arith.addf %10, %13 : vector<512x128xf32>
    %15 = math.roundeven %14 : vector<512x128xf32>
    %cst_11 = arith.constant -1.280000e+02 : f32
    %cst_12 = arith.constant 1.270000e+02 : f32
    %16 = vector.broadcast %cst_11 : f32 to vector<512x128xf32>
    %17 = arith.maximumf %16, %15 : vector<512x128xf32>
    %18 = vector.broadcast %cst_12 : f32 to vector<512x128xf32>
    %19 = arith.minimumf %18, %17 : vector<512x128xf32>
    %20 = arith.fptosi %19 : vector<512x128xf32> to vector<512x128xi8>
    %c0_13 = arith.constant 0 : index
    %c0_14 = arith.constant 0 : index
    %c0_15 = arith.constant 0 : index
    %21 = vector.load %arg6[%c0_13, %c0_14, %c0_15] : memref<1x512x128xi8, #tpu.memory_space<vmem>>, vector<1x512x128xi8>
    %22 = vector.shape_cast %21 : vector<1x512x128xi8> to vector<512x128xi8>
    %23 = vector.shape_cast %20 : vector<512x128xi8> to vector<1x512x128xi8>
    tpu.vector_store %arg6[%c0_13, %c0_14, %c0_15], %23 {strides = array<i32>} : memref<1x512x128xi8, #tpu.memory_space<vmem>>, vector<1x512x128xi8>,
    return
  }
  func.func @transform_0(%arg0: i32, %arg1: i32) -> (i32, i32, i32) {
    %c0_i32 = arith.constant 0 : i32
    %c0_i32_0 = arith.constant 0 : i32
    return %arg0, %arg1, %c0_i32 : i32, i32, i32
  }
  func.func @transform_1(%arg0: i32, %arg1: i32) -> (i32, i32, i32) {
    %c0_i32 = arith.constant 0 : i32
    %c0_i32_0 = arith.constant 0 : i32
    %c0_i32_1 = arith.constant 0 : i32
    return %arg0, %c0_i32, %c0_i32_0 : i32, i32, i32
  }
  func.func @transform_2(%arg0: i32, %arg1: i32) -> (i32, i32, i32) {
    %c0_i32 = arith.constant 0 : i32
    %c0_i32_0 = arith.constant 0 : i32
    %c0_i32_1 = arith.constant 0 : i32
    return %arg0, %c0_i32, %c0_i32_0 : i32, i32, i32
  }
  func.func @transform_3(%arg0: i32, %arg1: i32) -> (i32, i32, i32) {
    %c0_i32 = arith.constant 0 : i32
    %c0_i32_0 = arith.constant 0 : i32
    %c0_i32_1 = arith.constant 0 : i32
    return %arg0, %c0_i32, %c0_i32_0 : i32, i32, i32
  }
  func.func @transform_4(%arg0: i32, %arg1: i32) -> (i32, i32, i32) {
    %c0_i32 = arith.constant 0 : i32
    %c0_i32_0 = arith.constant 0 : i32
    return %arg0, %arg1, %c0_i32 : i32, i32, i32
  }
}

</mosaic_0001>

<llo_original>
// kernel: tpu_custom_call.1
$region0: #{tpu_custom_call.1}
  #allocation0 [shape = 'u32[]', space=smem, size = 0x4, offset = 0x4, fixed_abs, tag = 'smem constant byte address 0x4 - core index']
  #allocation1 [shape = 'u32[144,128]{1,0:T(1,128)}', space=vmem, size = 0x12000, scoped, tag = 'internal scratch']
  %s0 = inlined_call_operand.hbm [shape: s8[1,512,128], index: 0, kind: input, shape index: {}]
  %s1 = inlined_call_operand.hbm [shape: s8[1,128,128], index: 1, kind: input, shape index: {}]
  %s2 = inlined_call_operand.vmem [shape: f32[1,1,128], index: 2, kind: input, shape index: {}]
  %s3 = inlined_call_operand.vmem [shape: f32[1,1,128], index: 3, kind: input, shape index: {}]
  %s4 = inlined_call_operand.hbm [shape: s8[1,512,128], index: 4, kind: output, shape index: {}]
  %s5 = sld [smem:[#allocation0]]
  $region34: #{tpu_custom_call.1} parent=0
    _
  %s7 = ssub.s32 1, %s5
  %s8 = scalar_select 0, %s7, %s5
  $region1: #{tpu_custom_call.1} parent=0
    #allocation2 [shape = 'u8[65536]{0}', space=vmem, size = 0x10000, scoped, tag = 'input window, operand 0, single buffered']
    #allocation3 [shape = 's32[1]{0}', space=sflag, size = 0x4, scoped, tag = 'scoped memory for tpu_custom_call.1']
    #allocation4 [shape = 's32[1]{0}', space=sflag, size = 0x4, scoped, tag = 'scoped memory for tpu_custom_call.1']
    #allocation5 [shape = 'u8[16384]{0}', space=vmem, size = 0x4000, scoped, tag = 'input window, operand 1, single buffered']
    #allocation6 [shape = 's32[1]{0}', space=sflag, size = 0x4, scoped, tag = 'scoped memory for tpu_custom_call.1']
    #allocation7 [shape = 'u8[65536]{0}', space=vmem, size = 0x10000, scoped, tag = 'output window, operand 0, single buffered']
    %9 = vsyncpa [#allocation3], 0
    %10 = vsyncpa [#allocation6], 0
    %11 = vsyncpa [#allocation4], 0
    // Predicated region
    $region2: #{tpu_custom_call.1} parent=1 // pred_check
      _
    $region3: #{tpu_custom_call.1} parent=1 // pred_check_branch
      %13 = sbr.rel (0) target = $region5
    $region4: #{tpu_custom_call.1} parent=1 // pred_region
      %s15 = ssub.s32 2048, 2048
      %16 = vsyncadd [#allocation3], %s15
      %s17 = sshll.u32 [#allocation2], 4
      %s18 = int_to_ptr.vmem [resolvable:$true] %s17
      %23 = dma.hbm_to_vmem [thread:$0]  %s0, 2048, %s18, [#allocation3], 128, 128, 8
    $region5: #{tpu_custom_call.1} parent=1 // pred_fallthru
      _
    // Predicated region
    $region6: #{tpu_custom_call.1} parent=1 // pred_check
      _
    $region7: #{tpu_custom_call.1} parent=1 // pred_check_branch
      %25 = sbr.rel (0) target = $region9
    $region8: #{tpu_custom_call.1} parent=1 // pred_region
      %s27 = ssub.s32 512, 512
      %28 = vsyncadd [#allocation6], %s27
      %s29 = sshll.u32 [#allocation5], 4
      %s30 = int_to_ptr.vmem [resolvable:$true] %s29
      %35 = dma.hbm_to_vmem [thread:$0]  %s1, 512, %s30, [#allocation6], 128, 128, 8
    $region9: #{tpu_custom_call.1} parent=1 // pred_fallthru
      _
    // Predicated region
    $region10: #{tpu_custom_call.1} parent=1 // pred_check
      _
    $region11: #{tpu_custom_call.1} parent=1 // pred_check_branch
      %37 = sbr.rel (0) target = $region13
    $region12: #{tpu_custom_call.1} parent=1 // pred_region
      _
    $region13: #{tpu_custom_call.1} parent=1 // pred_fallthru
      _
    // Predicated region
    $region14: #{tpu_custom_call.1} parent=1 // pred_check
      _
    $region15: #{tpu_custom_call.1} parent=1 // pred_check_branch
      %39 = sbr.rel (0) target = $region17
    $region16: #{tpu_custom_call.1} parent=1 // pred_region
      _
    $region17: #{tpu_custom_call.1} parent=1 // pred_fallthru
      _
    // Predicated region
    $region18: #{tpu_custom_call.1} parent=1 // pred_check
      _
    $region19: #{tpu_custom_call.1} parent=1 // pred_check_branch
      %41 = sbr.rel (0) target = $region21
    $region20: #{tpu_custom_call.1} parent=1 // pred_region
      %42 = dma.done [#allocation3], 2048
    $region21: #{tpu_custom_call.1} parent=1 // pred_fallthru
      _
    // Predicated region
    $region22: #{tpu_custom_call.1} parent=1 // pred_check
      _
    $region23: #{tpu_custom_call.1} parent=1 // pred_check_branch
      %44 = sbr.rel (0) target = $region25
    $region24: #{tpu_custom_call.1} parent=1 // pred_region
      %45 = dma.done [#allocation6], 512
    $region25: #{tpu_custom_call.1} parent=1 // pred_fallthru
      _
    %v47 = vld [vmem:[#allocation2] sm:$0xff]
    %v48 = vld [vmem:[#allocation2 + $0x8] sm:$0xff]
    %v49 = vld [vmem:[#allocation2 + $0x10] sm:$0xff]
    %v50 = vld [vmem:[#allocation2 + $0x18] sm:$0xff]
    %v51 = vld [vmem:[#allocation2 + $0x20] sm:$0xff]
    %v52 = vld [vmem:[#allocation2 + $0x28] sm:$0xff]
    %v53 = vld [vmem:[#allocation2 + $0x30] sm:$0xff]
    %v54 = vld [vmem:[#allocation2 + $0x38] sm:$0xff]
    %v55 = vld [vmem:[#allocation2 + $0x40] sm:$0xff]
    %v56 = vld [vmem:[#allocation2 + $0x48] sm:$0xff]
    %v57 = vld [vmem:[#allocation2 + $0x50] sm:$0xff]
    %v58 = vld [vmem:[#allocation2 + $0x58] sm:$0xff]
    %v59 = vld [vmem:[#allocation2 + $0x60] sm:$0xff]
    %v60 = vld [vmem:[#allocation2 + $0x68] sm:$0xff]
    %v61 = vld [vmem:[#allocation2 + $0x70] sm:$0xff]
    %v62 = vld [vmem:[#allocation2 + $0x78] sm:$0xff]
    %v63 = vunpack.c.l.s8.bf16 %v47
    %v64 = vunpack.c.h.s8.bf16 %v47
    %v65 = vunpack.c.l.s8.bf16 %v48
    %v66 = vunpack.c.h.s8.bf16 %v48
    %v67 = vunpack.c.l.s8.bf16 %v49
    %v68 = vunpack.c.h.s8.bf16 %v49
    %v69 = vunpack.c.l.s8.bf16 %v50
    %v70 = vunpack.c.h.s8.bf16 %v50
    %v71 = vunpack.c.l.s8.bf16 %v51
    %v72 = vunpack.c.h.s8.bf16 %v51
    %v73 = vunpack.c.l.s8.bf16 %v52
    %v74 = vunpack.c.h.s8.bf16 %v52
    %v75 = vunpack.c.l.s8.bf16 %v53
    %v76 = vunpack.c.h.s8.bf16 %v53
    %v77 = vunpack.c.l.s8.bf16 %v54
    %v78 = vunpack.c.h.s8.bf16 %v54
    %v79 = vunpack.c.l.s8.bf16 %v55
    %v80 = vunpack.c.h.s8.bf16 %v55
    %v81 = vunpack.c.l.s8.bf16 %v56
    %v82 = vunpack.c.h.s8.bf16 %v56
    %v83 = vunpack.c.l.s8.bf16 %v57
    %v84 = vunpack.c.h.s8.bf16 %v57
    %v85 = vunpack.c.l.s8.bf16 %v58
    %v86 = vunpack.c.h.s8.bf16 %v58
    %v87 = vunpack.c.l.s8.bf16 %v59
    %v88 = vunpack.c.h.s8.bf16 %v59
    %v89 = vunpack.c.l.s8.bf16 %v60
    %v90 = vunpack.c.h.s8.bf16 %v60
    %v91 = vunpack.c.l.s8.bf16 %v61
    %v92 = vunpack.c.h.s8.bf16 %v61
    %v93 = vunpack.c.l.s8.bf16 %v62
    %v94 = vunpack.c.h.s8.bf16 %v62
    %v95 = vld [vmem:[#allocation5] sm:$0xff]
    %v96 = vld [vmem:[#allocation5 + $0x8] sm:$0xff]
    %v97 = vld [vmem:[#allocation5 + $0x10] sm:$0xff]
    %v98 = vld [vmem:[#allocation5 + $0x18] sm:$0xff]
    %v99 = vunpack.c.l.s8.bf16 %v95
    %v100 = vunpack.c.h.s8.bf16 %v95
    %v101 = vunpack.c.l.s8.bf16 %v96
    %v102 = vunpack.c.h.s8.bf16 %v96
    %v103 = vunpack.c.l.s8.bf16 %v97
    %v104 = vunpack.c.h.s8.bf16 %v97
    %v105 = vunpack.c.l.s8.bf16 %v98
    %v106 = vunpack.c.h.s8.bf16 %v98
    %107 = vmatprep.subr.bf16.mxu0 0
    %108 = vmatpush1.bf16.msra.mxu0 %v99
    %109 = vmatprep.subr.bf16.mxu0 0
    %110 = vmatpush1.bf16.msra.mxu0 %v100
    %111 = vmatprep.subr.bf16.mxu0 0
    %112 = vmatpush1.bf16.msra.mxu0 %v101
    %113 = vmatprep.subr.bf16.mxu0 0
    %114 = vmatpush1.bf16.msra.mxu0 %v102
    %115 = vmatprep.subr.bf16.mxu0 0
    %116 = vmatpush1.bf16.msra.mxu0 %v103
    %117 = vmatprep.subr.bf16.mxu0 0
    %118 = vmatpush1.bf16.msra.mxu0 %v104
    %119 = vmatprep.subr.bf16.mxu0 0
    %120 = vmatpush1.bf16.msra.mxu0 %v105
    %121 = vmatprep.subr.bf16.mxu0 0
    %122 = vmatpush1.bf16.msra.mxu0 %v106
    %123 = vmatprep.subr.bf16.mxu0 0
    %124 = vmatpush1.bf16.msra.mxu0 0
    %125 = vmatprep.subr.bf16.mxu0 0
    %126 = vmatpush1.bf16.msra.mxu0 0
    %127 = vmatprep.subr.bf16.mxu0 0
    %128 = vmatpush1.bf16.msra.mxu0 0
    %129 = vmatprep.subr.bf16.mxu0 0
    %130 = vmatpush1.bf16.msra.mxu0 0
    %131 = vmatprep.subr.bf16.mxu0 0
    %132 = vmatpush1.bf16.msra.mxu0 0
    %133 = vmatprep.subr.bf16.mxu0 0
    %134 = vmatpush1.bf16.msra.mxu0 0
    %135 = vmatprep.subr.bf16.mxu0 0
    %136 = vmatpush1.bf16.msra.mxu0 0
    %137 = vmatprep.subr.bf16.mxu0 0
    %138 = vmatpush1.bf16.msra.mxu0 0
    %139 = vmatprep.mubr.bf16.mxu0 0
    %140 = vmatmul.mubr.bf16.gmra.mrb[0].mxu0 %v63
    %v141 = vpop.f32.mrb[0].mxu0
    %v142 = vadd.f32 0.0, %v141
    %v143 = vpop.f32.mrb[0].mxu0
    %v144 = vpop.f32.mrb[0].mxu0
    %v145 = vadd.f32 0.0, %v144
    %v146 = vpop.f32.mrb[0].mxu0
    %147 = vmatprep.mubr.bf16.mxu0 0
    %148 = vmatmul.mubr.bf16.gmra.mrb[0].mxu0 %v64
    %v149 = vpop.f32.mrb[0].mxu0
    %v150 = vadd.f32 0.0, %v149
    %v151 = vpop.f32.mrb[0].mxu0
    %v152 = vpop.f32.mrb[0].mxu0
    %v153 = vadd.f32 0.0, %v152
    %v154 = vpop.f32.mrb[0].mxu0
    %155 = vmatprep.mubr.bf16.mxu0 0
    %156 = vmatmul.mubr.bf16.gmra.mrb[0].mxu0 %v65
    %v157 = vpop.f32.mrb[0].mxu0
    %v158 = vadd.f32 0.0, %v157
    %v159 = vpop.f32.mrb[0].mxu0
    %v160 = vpop.f32.mrb[0].mxu0
    %v161 = vadd.f32 0.0, %v160
    %v162 = vpop.f32.mrb[0].mxu0
    %163 = vmatprep.mubr.bf16.mxu0 0
    %164 = vmatmul.mubr.bf16.gmra.mrb[0].mxu0 %v66
    %v165 = vpop.f32.mrb[0].mxu0
    %v166 = vadd.f32 0.0, %v165
    %v167 = vpop.f32.mrb[0].mxu0
    %v168 = vpop.f32.mrb[0].mxu0
    %v169 = vadd.f32 0.0, %v168
    %v170 = vpop.f32.mrb[0].mxu0
    %171 = vmatprep.mubr.bf16.mxu0 0
    %172 = vmatmul.mubr.bf16.gmra.mrb[0].mxu0 %v67
    %v173 = vpop.f32.mrb[0].mxu0
    %v174 = vadd.f32 0.0, %v173
    %v175 = vpop.f32.mrb[0].mxu0
    %v176 = vpop.f32.mrb[0].mxu0
    %v177 = vadd.f32 0.0, %v176
    %v178 = vpop.f32.mrb[0].mxu0
    %179 = vmatprep.mubr.bf16.mxu0 0
    %180 = vmatmul.mubr.bf16.gmra.mrb[0].mxu0 %v68
    %v181 = vpop.f32.mrb[0].mxu0
    %v182 = vadd.f32 0.0, %v181
    %v183 = vpop.f32.mrb[0].mxu0
    %v184 = vpop.f32.mrb[0].mxu0
    %v185 = vadd.f32 0.0, %v184
    %v186 = vpop.f32.mrb[0].mxu0
    %187 = vmatprep.mubr.bf16.mxu0 0
    %188 = vmatmul.mubr.bf16.gmra.mrb[0].mxu0 %v69
    %v189 = vpop.f32.mrb[0].mxu0
    %v190 = vadd.f32 0.0, %v189
    %v191 = vpop.f32.mrb[0].mxu0
    %v192 = vpop.f32.mrb[0].mxu0
    %v193 = vadd.f32 0.0, %v192
    %v194 = vpop.f32.mrb[0].mxu0
    %195 = vmatprep.mubr.bf16.mxu0 0
    %196 = vmatmul.mubr.bf16.gmra.mrb[0].mxu0 %v70
    %v197 = vpop.f32.mrb[0].mxu0
    %v198 = vadd.f32 0.0, %v197
    %v199 = vpop.f32.mrb[0].mxu0
    %v200 = vpop.f32.mrb[0].mxu0
    %v201 = vadd.f32 0.0, %v200
    %v202 = vpop.f32.mrb[0].mxu0
    %203 = vmatprep.mubr.bf16.mxu0 0
    %204 = vmatmul.mubr.bf16.gmra.mrb[0].mxu0 %v71
    %v205 = vpop.f32.mrb[0].mxu0
    %v206 = vadd.f32 0.0, %v205
    %v207 = vpop.f32.mrb[0].mxu0
    %v208 = vpop.f32.mrb[0].mxu0
    %v209 = vadd.f32 0.0, %v208
    %v210 = vpop.f32.mrb[0].mxu0
    %211 = vmatprep.mubr.bf16.mxu0 0
    %212 = vmatmul.mubr.bf16.gmra.mrb[0].mxu0 %v72
    %v213 = vpop.f32.mrb[0].mxu0
    %v214 = vadd.f32 0.0, %v213
    %v215 = vpop.f32.mrb[0].mxu0
    %v216 = vpop.f32.mrb[0].mxu0
    %v217 = vadd.f32 0.0, %v216
    %v218 = vpop.f32.mrb[0].mxu0
    %219 = vmatprep.mubr.bf16.mxu0 0
    %220 = vmatmul.mubr.bf16.gmra.mrb[0].mxu0 %v73
    %v221 = vpop.f32.mrb[0].mxu0
    %v222 = vadd.f32 0.0, %v221
    %v223 = vpop.f32.mrb[0].mxu0
    %v224 = vpop.f32.mrb[0].mxu0
    %v225 = vadd.f32 0.0, %v224
    %v226 = vpop.f32.mrb[0].mxu0
    %227 = vmatprep.mubr.bf16.mxu0 0
    %228 = vmatmul.mubr.bf16.gmra.mrb[0].mxu0 %v74
    %v229 = vpop.f32.mrb[0].mxu0
    %v230 = vadd.f32 0.0, %v229
    %v231 = vpop.f32.mrb[0].mxu0
    %v232 = vpop.f32.mrb[0].mxu0
    %v233 = vadd.f32 0.0, %v232
    %v234 = vpop.f32.mrb[0].mxu0
    %235 = vmatprep.mubr.bf16.mxu0 0
    %236 = vmatmul.mubr.bf16.gmra.mrb[0].mxu0 %v75
    %v237 = vpop.f32.mrb[0].mxu0
    %v238 = vadd.f32 0.0, %v237
    %v239 = vpop.f32.mrb[0].mxu0
    %v240 = vpop.f32.mrb[0].mxu0
    %v241 = vadd.f32 0.0, %v240
    %v242 = vpop.f32.mrb[0].mxu0
    %243 = vmatprep.mubr.bf16.mxu0 0
    %244 = vmatmul.mubr.bf16.gmra.mrb[0].mxu0 %v76
    %v245 = vpop.f32.mrb[0].mxu0
    %v246 = vadd.f32 0.0, %v245
    %v247 = vpop.f32.mrb[0].mxu0
    %v248 = vpop.f32.mrb[0].mxu0
    %v249 = vadd.f32 0.0, %v248
    %v250 = vpop.f32.mrb[0].mxu0
    %251 = vmatprep.mubr.bf16.mxu0 0
    %252 = vmatmul.mubr.bf16.gmra.mrb[0].mxu0 %v77
    %v253 = vpop.f32.mrb[0].mxu0
    %v254 = vadd.f32 0.0, %v253
    %v255 = vpop.f32.mrb[0].mxu0
    %v256 = vpop.f32.mrb[0].mxu0
    %v257 = vadd.f32 0.0, %v256
    %v258 = vpop.f32.mrb[0].mxu0
    %259 = vmatprep.mubr.bf16.mxu0 0
    %260 = vmatmul.mubr.bf16.gmra.mrb[0].mxu0 %v78
    %v261 = vpop.f32.mrb[0].mxu0
    %v262 = vadd.f32 0.0, %v261
    %v263 = vpop.f32.mrb[0].mxu0
    %v264 = vpop.f32.mrb[0].mxu0
    %v265 = vadd.f32 0.0, %v264
    %v266 = vpop.f32.mrb[0].mxu0
    %267 = vmatprep.mubr.bf16.mxu0 0
    %268 = vmatmul.mubr.bf16.gmra.mrb[0].mxu0 %v79
    %v269 = vpop.f32.mrb[0].mxu0
    %v270 = vadd.f32 0.0, %v269
    %v271 = vpop.f32.mrb[0].mxu0
    %v272 = vpop.f32.mrb[0].mxu0
    %v273 = vadd.f32 0.0, %v272
    %v274 = vpop.f32.mrb[0].mxu0
    %275 = vmatprep.mubr.bf16.mxu0 0
    %276 = vmatmul.mubr.bf16.gmra.mrb[0].mxu0 %v80
    %v277 = vpop.f32.mrb[0].mxu0
    %v278 = vadd.f32 0.0, %v277
    %v279 = vpop.f32.mrb[0].mxu0
    %v280 = vpop.f32.mrb[0].mxu0
    %v281 = vadd.f32 0.0, %v280
    %v282 = vpop.f32.mrb[0].mxu0
    %283 = vmatprep.mubr.bf16.mxu0 0
    %284 = vmatmul.mubr.bf16.gmra.mrb[0].mxu0 %v81
    %v285 = vpop.f32.mrb[0].mxu0
    %v286 = vadd.f32 0.0, %v285
    %v287 = vpop.f32.mrb[0].mxu0
    %v288 = vpop.f32.mrb[0].mxu0
    %v289 = vadd.f32 0.0, %v288
    %v290 = vpop.f32.mrb[0].mxu0
    %291 = vmatprep.mubr.bf16.mxu0 0
    %292 = vmatmul.mubr.bf16.gmra.mrb[0].mxu0 %v82
    %v293 = vpop.f32.mrb[0].mxu0
    %v294 = vadd.f32 0.0, %v293
    %v295 = vpop.f32.mrb[0].mxu0
    %v296 = vpop.f32.mrb[0].mxu0
    %v297 = vadd.f32 0.0, %v296
    %v298 = vpop.f32.mrb[0].mxu0
    %299 = vmatprep.mubr.bf16.mxu0 0
    %300 = vmatmul.mubr.bf16.gmra.mrb[0].mxu0 %v83
    %v301 = vpop.f32.mrb[0].mxu0
    %v302 = vadd.f32 0.0, %v301
    %v303 = vpop.f32.mrb[0].mxu0
    %v304 = vpop.f32.mrb[0].mxu0
    %v305 = vadd.f32 0.0, %v304
    %v306 = vpop.f32.mrb[0].mxu0
    %307 = vmatprep.mubr.bf16.mxu0 0
    %308 = vmatmul.mubr.bf16.gmra.mrb[0].mxu0 %v84
    %v309 = vpop.f32.mrb[0].mxu0
    %v310 = vadd.f32 0.0, %v309
    %v311 = vpop.f32.mrb[0].mxu0
    %v312 = vpop.f32.mrb[0].mxu0
    %v313 = vadd.f32 0.0, %v312
    %v314 = vpop.f32.mrb[0].mxu0
    %315 = vmatprep.mubr.bf16.mxu0 0
    %316 = vmatmul.mubr.bf16.gmra.mrb[0].mxu0 %v85
    %v317 = vpop.f32.mrb[0].mxu0
    %v318 = vadd.f32 0.0, %v317
    %v319 = vpop.f32.mrb[0].mxu0
    %v320 = vpop.f32.mrb[0].mxu0
    %v321 = vadd.f32 0.0, %v320
    %v322 = vpop.f32.mrb[0].mxu0
    %323 = vmatprep.mubr.bf16.mxu0 0
    %324 = vmatmul.mubr.bf16.gmra.mrb[0].mxu0 %v86
    %v325 = vpop.f32.mrb[0].mxu0
    %v326 = vadd.f32 0.0, %v325
    %v327 = vpop.f32.mrb[0].mxu0
    %v328 = vpop.f32.mrb[0].mxu0
    %v329 = vadd.f32 0.0, %v328
    %v330 = vpop.f32.mrb[0].mxu0
    %331 = vmatprep.mubr.bf16.mxu0 0
    %332 = vmatmul.mubr.bf16.gmra.mrb[0].mxu0 %v87
    %v333 = vpop.f32.mrb[0].mxu0
    %v334 = vadd.f32 0.0, %v333
    %v335 = vpop.f32.mrb[0].mxu0
    %v336 = vpop.f32.mrb[0].mxu0
    %v337 = vadd.f32 0.0, %v336
    %v338 = vpop.f32.mrb[0].mxu0
    %339 = vmatprep.mubr.bf16.mxu0 0
    %340 = vmatmul.mubr.bf16.gmra.mrb[0].mxu0 %v88
    %v341 = vpop.f32.mrb[0].mxu0
    %v342 = vadd.f32 0.0, %v341
    %v343 = vpop.f32.mrb[0].mxu0
    %v344 = vpop.f32.mrb[0].mxu0
    %v345 = vadd.f32 0.0, %v344
    %v346 = vpop.f32.mrb[0].mxu0
    %347 = vmatprep.mubr.bf16.mxu0 0
    %348 = vmatmul.mubr.bf16.gmra.mrb[0].mxu0 %v89
    %v349 = vpop.f32.mrb[0].mxu0
    %v350 = vadd.f32 0.0, %v349
    %v351 = vpop.f32.mrb[0].mxu0
    %v352 = vpop.f32.mrb[0].mxu0
    %v353 = vadd.f32 0.0, %v352
    %v354 = vpop.f32.mrb[0].mxu0
    %355 = vmatprep.mubr.bf16.mxu0 0
    %356 = vmatmul.mubr.bf16.gmra.mrb[0].mxu0 %v90
    %v357 = vpop.f32.mrb[0].mxu0
    %v358 = vadd.f32 0.0, %v357
    %v359 = vpop.f32.mrb[0].mxu0
    %v360 = vpop.f32.mrb[0].mxu0
    %v361 = vadd.f32 0.0, %v360
    %v362 = vpop.f32.mrb[0].mxu0
    %363 = vmatprep.mubr.bf16.mxu0 0
    %364 = vmatmul.mubr.bf16.gmra.mrb[0].mxu0 %v91
    %v365 = vpop.f32.mrb[0].mxu0
    %v366 = vadd.f32 0.0, %v365
    %v367 = vpop.f32.mrb[0].mxu0
    %v368 = vpop.f32.mrb[0].mxu0
    %v369 = vadd.f32 0.0, %v368
    %v370 = vpop.f32.mrb[0].mxu0
    %371 = vmatprep.mubr.bf16.mxu0 0
    %372 = vmatmul.mubr.bf16.gmra.mrb[0].mxu0 %v92
    %v373 = vpop.f32.mrb[0].mxu0
    %v374 = vadd.f32 0.0, %v373
    %v375 = vpop.f32.mrb[0].mxu0
    %v376 = vpop.f32.mrb[0].mxu0
    %v377 = vadd.f32 0.0, %v376
    %v378 = vpop.f32.mrb[0].mxu0
    %379 = vmatprep.mubr.bf16.mxu0 0
    %380 = vmatmul.mubr.bf16.gmra.mrb[0].mxu0 %v93
    %v381 = vpop.f32.mrb[0].mxu0
    %v382 = vadd.f32 0.0, %v381
    %v383 = vpop.f32.mrb[0].mxu0
    %v384 = vpop.f32.mrb[0].mxu0
    %v385 = vadd.f32 0.0, %v384
    %v386 = vpop.f32.mrb[0].mxu0
    %387 = vmatprep.mubr.bf16.mxu0 0
    %388 = vmatmul.mubr.bf16.gmra.mrb[0].mxu0 %v94
    %v389 = vpop.f32.mrb[0].mxu0
    %v390 = vadd.f32 0.0, %v389
    %v391 = vpop.f32.mrb[0].mxu0
    %v392 = vpop.f32.mrb[0].mxu0
    %v393 = vadd.f32 0.0, %v392
    %v394 = vpop.f32.mrb[0].mxu0
    %395 = vdwg.mxu0
    %v396 = vld [vmem:[%s3] sm:$0x1]
    %v398 = vlaneseq
    %v399 = vshrl.u32 %v398, 7
    %v400 = vsub.s32 0, %v399
    %v401 = vrot.slane %v396, %v400
    %v403 = vmul.f32 %v142, %v401
    %v404 = vmul.f32 %v145, %v401
    %v405 = vmul.f32 %v150, %v401
    %v406 = vmul.f32 %v153, %v401
    %v407 = vmul.f32 %v158, %v401
    %v408 = vmul.f32 %v161, %v401
    %v409 = vmul.f32 %v166, %v401
    %v410 = vmul.f32 %v169, %v401
    %v411 = vmul.f32 %v174, %v401
    %v412 = vmul.f32 %v177, %v401
    %v413 = vmul.f32 %v182, %v401
    %v414 = vmul.f32 %v185, %v401
    %v415 = vmul.f32 %v190, %v401
    %v416 = vmul.f32 %v193, %v401
    %v417 = vmul.f32 %v198, %v401
    %v418 = vmul.f32 %v201, %v401
    %v419 = vmul.f32 %v206, %v401
    %v420 = vmul.f32 %v209, %v401
    %v421 = vmul.f32 %v214, %v401
    %v422 = vmul.f32 %v217, %v401
    %v423 = vmul.f32 %v222, %v401
    %v424 = vmul.f32 %v225, %v401
    %v425 = vmul.f32 %v230, %v401
    %v426 = vmul.f32 %v233, %v401
    %v427 = vmul.f32 %v238, %v401
    %v428 = vmul.f32 %v241, %v401
    %v429 = vmul.f32 %v246, %v401
    %v430 = vmul.f32 %v249, %v401
    %v431 = vmul.f32 %v254, %v401
    %v432 = vmul.f32 %v257, %v401
    %v433 = vmul.f32 %v262, %v401
    %v434 = vmul.f32 %v265, %v401
    %v435 = vmul.f32 %v270, %v401
    %v436 = vmul.f32 %v273, %v401
    %v437 = vmul.f32 %v278, %v401
    %v438 = vmul.f32 %v281, %v401
    %v439 = vmul.f32 %v286, %v401
    %v440 = vmul.f32 %v289, %v401
    %v441 = vmul.f32 %v294, %v401
    %v442 = vmul.f32 %v297, %v401
    %v443 = vmul.f32 %v302, %v401
    %v444 = vmul.f32 %v305, %v401
    %v445 = vmul.f32 %v310, %v401
    %v446 = vmul.f32 %v313, %v401
    %v447 = vmul.f32 %v318, %v401
    %v448 = vmul.f32 %v321, %v401
    %v449 = vmul.f32 %v326, %v401
    %v450 = vmul.f32 %v329, %v401
    %v451 = vmul.f32 %v334, %v401
    %v452 = vmul.f32 %v337, %v401
    %v453 = vmul.f32 %v342, %v401
    %v454 = vmul.f32 %v345, %v401
    %v455 = vmul.f32 %v350, %v401
    %v456 = vmul.f32 %v353, %v401
    %v457 = vmul.f32 %v358, %v401
    %v458 = vmul.f32 %v361, %v401
    %v459 = vmul.f32 %v366, %v401
    %v460 = vmul.f32 %v369, %v401
    %v461 = vmul.f32 %v374, %v401
    %v462 = vmul.f32 %v377, %v401
    %v463 = vmul.f32 %v382, %v401
    %v464 = vmul.f32 %v385, %v401
    %v465 = vmul.f32 %v390, %v401
    %v466 = vmul.f32 %v393, %v401
    %v467 = vld [vmem:[%s2] sm:$0x1]
    %v469 = vlaneseq
    %v470 = vshrl.u32 %v469, 7
    %v471 = vsub.s32 0, %v470
    %v472 = vrot.slane %v467, %v471
    %v474 = vadd.f32 %v403, %v472
    %v475 = vadd.f32 %v404, %v472
    %v476 = vadd.f32 %v405, %v472
    %v477 = vadd.f32 %v406, %v472
    %v478 = vadd.f32 %v407, %v472
    %v479 = vadd.f32 %v408, %v472
    %v480 = vadd.f32 %v409, %v472
    %v481 = vadd.f32 %v410, %v472
    %v482 = vadd.f32 %v411, %v472
    %v483 = vadd.f32 %v412, %v472
    %v484 = vadd.f32 %v413, %v472
    %v485 = vadd.f32 %v414, %v472
    %v486 = vadd.f32 %v415, %v472
    %v487 = vadd.f32 %v416, %v472
    %v488 = vadd.f32 %v417, %v472
    %v489 = vadd.f32 %v418, %v472
    %v490 = vadd.f32 %v419, %v472
    %v491 = vadd.f32 %v420, %v472
    %v492 = vadd.f32 %v421, %v472
    %v493 = vadd.f32 %v422, %v472
    %v494 = vadd.f32 %v423, %v472
    %v495 = vadd.f32 %v424, %v472
    %v496 = vadd.f32 %v425, %v472
    %v497 = vadd.f32 %v426, %v472
    %v498 = vadd.f32 %v427, %v472
    %v499 = vadd.f32 %v428, %v472
    %v500 = vadd.f32 %v429, %v472
    %v501 = vadd.f32 %v430, %v472
    %v502 = vadd.f32 %v431, %v472
    %v503 = vadd.f32 %v432, %v472
    %v504 = vadd.f32 %v433, %v472
    %v505 = vadd.f32 %v434, %v472
    %v506 = vadd.f32 %v435, %v472
    %v507 = vadd.f32 %v436, %v472
    %v508 = vadd.f32 %v437, %v472
    %v509 = vadd.f32 %v438, %v472
    %v510 = vadd.f32 %v439, %v472
    %v511 = vadd.f32 %v440, %v472
    %v512 = vadd.f32 %v441, %v472
    %v513 = vadd.f32 %v442, %v472
    %v514 = vadd.f32 %v443, %v472
    %v515 = vadd.f32 %v444, %v472
    %v516 = vadd.f32 %v445, %v472
    %v517 = vadd.f32 %v446, %v472
    %v518 = vadd.f32 %v447, %v472
    %v519 = vadd.f32 %v448, %v472
    %v520 = vadd.f32 %v449, %v472
    %v521 = vadd.f32 %v450, %v472
    %v522 = vadd.f32 %v451, %v472
    %v523 = vadd.f32 %v452, %v472
    %v524 = vadd.f32 %v453, %v472
    %v525 = vadd.f32 %v454, %v472
    %v526 = vadd.f32 %v455, %v472
    %v527 = vadd.f32 %v456, %v472
    %v528 = vadd.f32 %v457, %v472
    %v529 = vadd.f32 %v458, %v472
    %v530 = vadd.f32 %v459, %v472
    %v531 = vadd.f32 %v460, %v472
    %v532 = vadd.f32 %v461, %v472
    %v533 = vadd.f32 %v462, %v472
    %v534 = vadd.f32 %v463, %v472
    %v535 = vadd.f32 %v464, %v472
    %v536 = vadd.f32 %v465, %v472
    %v537 = vadd.f32 %v466, %v472
    %v538 = vround.ne.pseudo %v474
    %v539 = vround.ne.pseudo %v475
    %v540 = vround.ne.pseudo %v476
    %v541 = vround.ne.pseudo %v477
    %v542 = vround.ne.pseudo %v478
    %v543 = vround.ne.pseudo %v479
    %v544 = vround.ne.pseudo %v480
    %v545 = vround.ne.pseudo %v481
    %v546 = vround.ne.pseudo %v482
    %v547 = vround.ne.pseudo %v483
    %v548 = vround.ne.pseudo %v484
    %v549 = vround.ne.pseudo %v485
    %v550 = vround.ne.pseudo %v486
    %v551 = vround.ne.pseudo %v487
    %v552 = vround.ne.pseudo %v488
    %v553 = vround.ne.pseudo %v489
    %v554 = vround.ne.pseudo %v490
    %v555 = vround.ne.pseudo %v491
    %v556 = vround.ne.pseudo %v492
    %v557 = vround.ne.pseudo %v493
    %v558 = vround.ne.pseudo %v494
    %v559 = vround.ne.pseudo %v495
    %v560 = vround.ne.pseudo %v496
    %v561 = vround.ne.pseudo %v497
    %v562 = vround.ne.pseudo %v498
    %v563 = vround.ne.pseudo %v499
    %v564 = vround.ne.pseudo %v500
    %v565 = vround.ne.pseudo %v501
    %v566 = vround.ne.pseudo %v502
    %v567 = vround.ne.pseudo %v503
    %v568 = vround.ne.pseudo %v504
    %v569 = vround.ne.pseudo %v505
    %v570 = vround.ne.pseudo %v506
    %v571 = vround.ne.pseudo %v507
    %v572 = vround.ne.pseudo %v508
    %v573 = vround.ne.pseudo %v509
    %v574 = vround.ne.pseudo %v510
    %v575 = vround.ne.pseudo %v511
    %v576 = vround.ne.pseudo %v512
    %v577 = vround.ne.pseudo %v513
    %v578 = vround.ne.pseudo %v514
    %v579 = vround.ne.pseudo %v515
    %v580 = vround.ne.pseudo %v516
    %v581 = vround.ne.pseudo %v517
    %v582 = vround.ne.pseudo %v518
    %v583 = vround.ne.pseudo %v519
    %v584 = vround.ne.pseudo %v520
    %v585 = vround.ne.pseudo %v521
    %v586 = vround.ne.pseudo %v522
    %v587 = vround.ne.pseudo %v523
    %v588 = vround.ne.pseudo %v524
    %v589 = vround.ne.pseudo %v525
    %v590 = vround.ne.pseudo %v526
    %v591 = vround.ne.pseudo %v527
    %v592 = vround.ne.pseudo %v528
    %v593 = vround.ne.pseudo %v529
    %v594 = vround.ne.pseudo %v530
    %v595 = vround.ne.pseudo %v531
    %v596 = vround.ne.pseudo %v532
    %v597 = vround.ne.pseudo %v533
    %v598 = vround.ne.pseudo %v534
    %v599 = vround.ne.pseudo %v535
    %v600 = vround.ne.pseudo %v536
    %v601 = vround.ne.pseudo %v537
    %v602 = vmax.f32 %v538, -128.0
    %v603 = vmax.f32 %v539, -128.0
    %v604 = vmax.f32 %v540, -128.0
    %v605 = vmax.f32 %v541, -128.0
    %v606 = vmax.f32 %v542, -128.0
    %v607 = vmax.f32 %v543, -128.0
    %v608 = vmax.f32 %v544, -128.0
    %v609 = vmax.f32 %v545, -128.0
    %v610 = vmax.f32 %v546, -128.0
    %v611 = vmax.f32 %v547, -128.0
    %v612 = vmax.f32 %v548, -128.0
    %v613 = vmax.f32 %v549, -128.0
    %v614 = vmax.f32 %v550, -128.0
    %v615 = vmax.f32 %v551, -128.0
    %v616 = vmax.f32 %v552, -128.0
    %v617 = vmax.f32 %v553, -128.0
    %v618 = vmax.f32 %v554, -128.0
    %v619 = vmax.f32 %v555, -128.0
    %v620 = vmax.f32 %v556, -128.0
    %v621 = vmax.f32 %v557, -128.0
    %v622 = vmax.f32 %v558, -128.0
    %v623 = vmax.f32 %v559, -128.0
    %v624 = vmax.f32 %v560, -128.0
    %v625 = vmax.f32 %v561, -128.0
    %v626 = vmax.f32 %v562, -128.0
    %v627 = vmax.f32 %v563, -128.0
    %v628 = vmax.f32 %v564, -128.0
    %v629 = vmax.f32 %v565, -128.0
    %v630 = vmax.f32 %v566, -128.0
    %v631 = vmax.f32 %v567, -128.0
    %v632 = vmax.f32 %v568, -128.0
    %v633 = vmax.f32 %v569, -128.0
    %v634 = vmax.f32 %v570, -128.0
    %v635 = vmax.f32 %v571, -128.0
    %v636 = vmax.f32 %v572, -128.0
    %v637 = vmax.f32 %v573, -128.0
    %v638 = vmax.f32 %v574, -128.0
    %v639 = vmax.f32 %v575, -128.0
    %v640 = vmax.f32 %v576, -128.0
    %v641 = vmax.f32 %v577, -128.0
    %v642 = vmax.f32 %v578, -128.0
    %v643 = vmax.f32 %v579, -128.0
    %v644 = vmax.f32 %v580, -128.0
    %v645 = vmax.f32 %v581, -128.0
    %v646 = vmax.f32 %v582, -128.0
    %v647 = vmax.f32 %v583, -128.0
    %v648 = vmax.f32 %v584, -128.0
    %v649 = vmax.f32 %v585, -128.0
    %v650 = vmax.f32 %v586, -128.0
    %v651 = vmax.f32 %v587, -128.0
    %v652 = vmax.f32 %v588, -128.0
    %v653 = vmax.f32 %v589, -128.0
    %v654 = vmax.f32 %v590, -128.0
    %v655 = vmax.f32 %v591, -128.0
    %v656 = vmax.f32 %v592, -128.0
    %v657 = vmax.f32 %v593, -128.0
    %v658 = vmax.f32 %v594, -128.0
    %v659 = vmax.f32 %v595, -128.0
    %v660 = vmax.f32 %v596, -128.0
    %v661 = vmax.f32 %v597, -128.0
    %v662 = vmax.f32 %v598, -128.0
    %v663 = vmax.f32 %v599, -128.0
    %v664 = vmax.f32 %v600, -128.0
    %v665 = vmax.f32 %v601, -128.0
    %v666 = vmin.f32 %v602, 127.0
    %v667 = vmin.f32 %v603, 127.0
    %v668 = vmin.f32 %v604, 127.0
    %v669 = vmin.f32 %v605, 127.0
    %v670 = vmin.f32 %v606, 127.0
    %v671 = vmin.f32 %v607, 127.0
    %v672 = vmin.f32 %v608, 127.0
    %v673 = vmin.f32 %v609, 127.0
    %v674 = vmin.f32 %v610, 127.0
    %v675 = vmin.f32 %v611, 127.0
    %v676 = vmin.f32 %v612, 127.0
    %v677 = vmin.f32 %v613, 127.0
    %v678 = vmin.f32 %v614, 127.0
    %v679 = vmin.f32 %v615, 127.0
    %v680 = vmin.f32 %v616, 127.0
    %v681 = vmin.f32 %v617, 127.0
    %v682 = vmin.f32 %v618, 127.0
    %v683 = vmin.f32 %v619, 127.0
    %v684 = vmin.f32 %v620, 127.0
    %v685 = vmin.f32 %v621, 127.0
    %v686 = vmin.f32 %v622, 127.0
    %v687 = vmin.f32 %v623, 127.0
    %v688 = vmin.f32 %v624, 127.0
    %v689 = vmin.f32 %v625, 127.0
    %v690 = vmin.f32 %v626, 127.0
    %v691 = vmin.f32 %v627, 127.0
    %v692 = vmin.f32 %v628, 127.0
    %v693 = vmin.f32 %v629, 127.0
    %v694 = vmin.f32 %v630, 127.0
    %v695 = vmin.f32 %v631, 127.0
    %v696 = vmin.f32 %v632, 127.0
    %v697 = vmin.f32 %v633, 127.0
    %v698 = vmin.f32 %v634, 127.0
    %v699 = vmin.f32 %v635, 127.0
    %v700 = vmin.f32 %v636, 127.0
    %v701 = vmin.f32 %v637, 127.0
    %v702 = vmin.f32 %v638, 127.0
    %v703 = vmin.f32 %v639, 127.0
    %v704 = vmin.f32 %v640, 127.0
    %v705 = vmin.f32 %v641, 127.0
    %v706 = vmin.f32 %v642, 127.0
    %v707 = vmin.f32 %v643, 127.0
    %v708 = vmin.f32 %v644, 127.0
    %v709 = vmin.f32 %v645, 127.0
    %v710 = vmin.f32 %v646, 127.0
    %v711 = vmin.f32 %v647, 127.0
    %v712 = vmin.f32 %v648, 127.0
    %v713 = vmin.f32 %v649, 127.0
    %v714 = vmin.f32 %v650, 127.0
    %v715 = vmin.f32 %v651, 127.0
    %v716 = vmin.f32 %v652, 127.0
    %v717 = vmin.f32 %v653, 127.0
    %v718 = vmin.f32 %v654, 127.0
    %v719 = vmin.f32 %v655, 127.0
    %v720 = vmin.f32 %v656, 127.0
    %v721 = vmin.f32 %v657, 127.0
    %v722 = vmin.f32 %v658, 127.0
    %v723 = vmin.f32 %v659, 127.0
    %v724 = vmin.f32 %v660, 127.0
    %v725 = vmin.f32 %v661, 127.0
    %v726 = vmin.f32 %v662, 127.0
    %v727 = vmin.f32 %v663, 127.0
    %v728 = vmin.f32 %v664, 127.0
    %v729 = vmin.f32 %v665, 127.0
    %v730 = vtrunc.f32 %v666
    %v731 = vtrunc.f32 %v667
    %v732 = vtrunc.f32 %v668
    %v733 = vtrunc.f32 %v669
    %v734 = vtrunc.f32 %v670
    %v735 = vtrunc.f32 %v671
    %v736 = vtrunc.f32 %v672
    %v737 = vtrunc.f32 %v673
    %v738 = vtrunc.f32 %v674
    %v739 = vtrunc.f32 %v675
    %v740 = vtrunc.f32 %v676
    %v741 = vtrunc.f32 %v677
    %v742 = vtrunc.f32 %v678
    %v743 = vtrunc.f32 %v679
    %v744 = vtrunc.f32 %v680
    %v745 = vtrunc.f32 %v681
    %v746 = vtrunc.f32 %v682
    %v747 = vtrunc.f32 %v683
    %v748 = vtrunc.f32 %v684
    %v749 = vtrunc.f32 %v685
    %v750 = vtrunc.f32 %v686
    %v751 = vtrunc.f32 %v687
    %v752 = vtrunc.f32 %v688
    %v753 = vtrunc.f32 %v689
    %v754 = vtrunc.f32 %v690
    %v755 = vtrunc.f32 %v691
    %v756 = vtrunc.f32 %v692
    %v757 = vtrunc.f32 %v693
    %v758 = vtrunc.f32 %v694
    %v759 = vtrunc.f32 %v695
    %v760 = vtrunc.f32 %v696
    %v761 = vtrunc.f32 %v697
    %v762 = vtrunc.f32 %v698
    %v763 = vtrunc.f32 %v699
    %v764 = vtrunc.f32 %v700
    %v765 = vtrunc.f32 %v701
    %v766 = vtrunc.f32 %v702
    %v767 = vtrunc.f32 %v703
    %v768 = vtrunc.f32 %v704
    %v769 = vtrunc.f32 %v705
    %v770 = vtrunc.f32 %v706
    %v771 = vtrunc.f32 %v707
    %v772 = vtrunc.f32 %v708
    %v773 = vtrunc.f32 %v709
    %v774 = vtrunc.f32 %v710
    %v775 = vtrunc.f32 %v711
    %v776 = vtrunc.f32 %v712
    %v777 = vtrunc.f32 %v713
    %v778 = vtrunc.f32 %v714
    %v779 = vtrunc.f32 %v715
    %v780 = vtrunc.f32 %v716
    %v781 = vtrunc.f32 %v717
    %v782 = vtrunc.f32 %v718
    %v783 = vtrunc.f32 %v719
    %v784 = vtrunc.f32 %v720
    %v785 = vtrunc.f32 %v721
    %v786 = vtrunc.f32 %v722
    %v787 = vtrunc.f32 %v723
    %v788 = vtrunc.f32 %v724
    %v789 = vtrunc.f32 %v725
    %v790 = vtrunc.f32 %v726
    %v791 = vtrunc.f32 %v727
    %v792 = vtrunc.f32 %v728
    %v793 = vtrunc.f32 %v729
    %v794 = vpack.c.f32.eXmY %v730, %v731, 312
    %v798 = vpack.c.f32.eXmY %v732, %v733, 312
    %v802 = vpack.c.b8 %v798, %v794
    %v804 = vpack.c.f32.eXmY %v734, %v735, 312
    %v808 = vpack.c.f32.eXmY %v736, %v737, 312
    %v812 = vpack.c.b8 %v808, %v804
    %v814 = vpack.c.f32.eXmY %v738, %v739, 312
    %v818 = vpack.c.f32.eXmY %v740, %v741, 312
    %v822 = vpack.c.b8 %v818, %v814
    %v824 = vpack.c.f32.eXmY %v742, %v743, 312
    %v828 = vpack.c.f32.eXmY %v744, %v745, 312
    %v832 = vpack.c.b8 %v828, %v824
    %v834 = vpack.c.f32.eXmY %v746, %v747, 312
    %v838 = vpack.c.f32.eXmY %v748, %v749, 312
    %v842 = vpack.c.b8 %v838, %v834
    %v844 = vpack.c.f32.eXmY %v750, %v751, 312
    %v848 = vpack.c.f32.eXmY %v752, %v753, 312
    %v852 = vpack.c.b8 %v848, %v844
    %v854 = vpack.c.f32.eXmY %v754, %v755, 312
    %v858 = vpack.c.f32.eXmY %v756, %v757, 312
    %v862 = vpack.c.b8 %v858, %v854
    %v864 = vpack.c.f32.eXmY %v758, %v759, 312
    %v868 = vpack.c.f32.eXmY %v760, %v761, 312
    %v872 = vpack.c.b8 %v868, %v864
    %v874 = vpack.c.f32.eXmY %v762, %v763, 312
    %v878 = vpack.c.f32.eXmY %v764, %v765, 312
    %v882 = vpack.c.b8 %v878, %v874
    %v884 = vpack.c.f32.eXmY %v766, %v767, 312
    %v888 = vpack.c.f32.eXmY %v768, %v769, 312
    %v892 = vpack.c.b8 %v888, %v884
    %v894 = vpack.c.f32.eXmY %v770, %v771, 312
    %v898 = vpack.c.f32.eXmY %v772, %v773, 312
    %v902 = vpack.c.b8 %v898, %v894
    %v904 = vpack.c.f32.eXmY %v774, %v775, 312
    %v908 = vpack.c.f32.eXmY %v776, %v777, 312
    %v912 = vpack.c.b8 %v908, %v904
    %v914 = vpack.c.f32.eXmY %v778, %v779, 312
    %v918 = vpack.c.f32.eXmY %v780, %v781, 312
    %v922 = vpack.c.b8 %v918, %v914
    %v924 = vpack.c.f32.eXmY %v782, %v783, 312
    %v928 = vpack.c.f32.eXmY %v784, %v785, 312
    %v932 = vpack.c.b8 %v928, %v924
    %v934 = vpack.c.f32.eXmY %v786, %v787, 312
    %v938 = vpack.c.f32.eXmY %v788, %v789, 312
    %v942 = vpack.c.b8 %v938, %v934
    %v944 = vpack.c.f32.eXmY %v790, %v791, 312
    %v948 = vpack.c.f32.eXmY %v792, %v793, 312
    %v952 = vpack.c.b8 %v948, %v944
    %954 = vst [vmem:[#allocation7] sm:$0xff] %v802
    %955 = vst [vmem:[#allocation7 + $0x8] sm:$0xff] %v812
    %956 = vst [vmem:[#allocation7 + $0x10] sm:$0xff] %v822
    %957 = vst [vmem:[#allocation7 + $0x18] sm:$0xff] %v832
    %958 = vst [vmem:[#allocation7 + $0x20] sm:$0xff] %v842
    %959 = vst [vmem:[#allocation7 + $0x28] sm:$0xff] %v852
    %960 = vst [vmem:[#allocation7 + $0x30] sm:$0xff] %v862
    %961 = vst [vmem:[#allocation7 + $0x38] sm:$0xff] %v872
    %962 = vst [vmem:[#allocation7 + $0x40] sm:$0xff] %v882
    %963 = vst [vmem:[#allocation7 + $0x48] sm:$0xff] %v892
    %964 = vst [vmem:[#allocation7 + $0x50] sm:$0xff] %v902
    %965 = vst [vmem:[#allocation7 + $0x58] sm:$0xff] %v912
    %966 = vst [vmem:[#allocation7 + $0x60] sm:$0xff] %v922
    %967 = vst [vmem:[#allocation7 + $0x68] sm:$0xff] %v932
    %968 = vst [vmem:[#allocation7 + $0x70] sm:$0xff] %v942
    %969 = vst [vmem:[#allocation7 + $0x78] sm:$0xff] %v952
    // Predicated region
    $region26: #{tpu_custom_call.1} parent=1 // pred_check
      _
    $region27: #{tpu_custom_call.1} parent=1 // pred_check_branch
      %971 = sbr.rel (0) target = $region29
    $region28: #{tpu_custom_call.1} parent=1 // pred_region
      %s973 = ssub.s32 2048, 2048
      %974 = vsyncadd [#allocation4], %s973
      %s975 = sshll.u32 [#allocation7], 4
      %s976 = int_to_ptr.vmem [resolvable:$true] %s975
      %981 = dma.vmem_to_hbm [thread:$0]  %s976, 2048, %s4, [#allocation4], 128, 128, 8
    $region29: #{tpu_custom_call.1} parent=1 // pred_fallthru
      _
    // Predicated region
    $region30: #{tpu_custom_call.1} parent=1 // pred_check
      _
    $region31: #{tpu_custom_call.1} parent=1 // pred_check_branch
      %983 = sbr.rel (0) target = $region33
    $region32: #{tpu_custom_call.1} parent=1 // pred_region
      %984 = dma.done [#allocation4], 2048
    $region33: #{tpu_custom_call.1} parent=1 // pred_fallthru
      _
    %985 = vsyncpa [#allocation3], 1
    %986 = vsyncpa [#allocation6], 1
    %987 = vsyncpa [#allocation4], 1

</llo_original>
